<compile_context>
chip_gen: v7x
topology: tpu7x:2x2x1
jax: 0.10.0
libtpu: 0.0.40
codegen_flags: <defaults>
</compile_context>

<pallas_src>
import functools

import jax
import jax.numpy as jnp
from jax.experimental import pallas as pl
from jax.experimental.pallas import tpu as pltpu

_LANES = 128
_SUBLANES = 8
_X_BUFFER_BYTES = 4 * 1024 * 1024      # per x tile (double-buffered by Pallas)
_VMEM_LIMIT_BYTES = 32 * 1024 * 1024   # safe on v5e / v6e / v7x


def _round_up(n, m):
    return ((n + m - 1) // m) * m


def _pick_batch_tile(n_rows, row_bytes):
    """Rows per grid step: byte-budgeted, multiple of 8, and >= 2 grid steps
    when there is enough work (so the 'parallel' axis can use both v7x TCs)."""
    tb = max(_SUBLANES, (_X_BUFFER_BYTES // row_bytes) // _SUBLANES * _SUBLANES)
    n8 = _round_up(n_rows, _SUBLANES)
    if n8 <= tb:
        # Whole batch fits one budget tile: split in two when big enough.
        tb = _round_up(n8 // 2, _SUBLANES) if n8 >= 2 * _SUBLANES else n8
    return tb


def _packed_linear_kernel(b_ref, x_ref, w_ref, o_ref):
    # Small-F path: k = 128 // F rows folded per 128-lane row; w_ref is the
    # matching (128, k) block-diagonal weight, so the reduction runs on the
    # MXU (no XLU cross-lane reduce in the saturating slot).
    bias = b_ref[0, 0]
    o_ref[...] = (
        jnp.dot(x_ref[...], w_ref[...], preferred_element_type=jnp.float32) + bias
    ).astype(o_ref.dtype)


def _rowsum_linear_kernel(b_ref, x_ref, w_ref, o_ref, *, n_feature):
    # General path: VPU multiply against the resident (1, F) weight row with a
    # two-stage reduction: accumulate 128-lane chunks elementwise on the VPU,
    # then ONE cross-lane (XLU) reduce of the (TB, 128) partial.
    bias = b_ref[0, 0]
    x = x_ref[...]
    w = w_ref[...]
    num_full = n_feature // _LANES
    rem = n_feature % _LANES

    acc = None
    if num_full > 0:
        partial = x[:, :_LANES] * w[:, :_LANES]
        for c in range(1, num_full):
            lo = c * _LANES
            partial = partial + x[:, lo:lo + _LANES] * w[:, lo:lo + _LANES]
        acc = jnp.sum(partial, axis=-1, keepdims=True)
    if rem > 0:
        lo = num_full * _LANES
        tail = jnp.sum(x[:, lo:] * w[:, lo:], axis=-1, keepdims=True)
        acc = tail if acc is None else acc + tail
    o_ref[...] = (acc + bias).astype(o_ref.dtype)


def _compiler_params():
    return pltpu.CompilerParams(
        dimension_semantics=("parallel",),
        vmem_limit_bytes=_VMEM_LIMIT_BYTES,
    )


def _forward_packed(x, w_row, b_smem, B, F, k):
    rows = B // k
    x_packed = x.reshape(rows, _LANES)  # free, contiguous row-major reshape

    # Block-diagonal (128, k) weight: column j carries w in lanes [j*F, (j+1)*F).
    w_block = (
        jnp.eye(k, dtype=jnp.float32)[:, None, :]
        * w_row.reshape(F)[None, :, None]
    ).reshape(_LANES, k)

    rows_alloc = rows
    if rows < _SUBLANES:  # tiny batch: negligible pad to one sublane
        x_packed = jnp.pad(x_packed, ((0, _SUBLANES - rows), (0, 0)))
        rows_alloc = _SUBLANES

    tb = _pick_batch_tile(rows_alloc, _LANES * 4)
    grid = (pl.cdiv(rows_alloc, tb),)

    y = pl.pallas_call(
        _packed_linear_kernel,
        out_shape=jax.ShapeDtypeStruct((rows_alloc, k), jnp.float32),
        grid=grid,
        in_specs=[
            pl.BlockSpec(memory_space=pltpu.MemorySpace.SMEM),  # bias scalar
            pl.BlockSpec((tb, _LANES), lambda i: (i, 0)),       # packed x tile
            pl.BlockSpec((_LANES, k), lambda i: (0, 0)),        # resident weight
        ],
        out_specs=pl.BlockSpec((tb, k), lambda i: (i, 0)),
        compiler_params=_compiler_params(),
    )(b_smem, x_packed, w_block)

    return y[:rows].reshape(B, 1)


def _forward_general(x, w_row, b_smem, B, F):
    rows_alloc = B
    if B < _SUBLANES:  # tiny batch: negligible pad to one sublane
        x = jnp.pad(x, ((0, _SUBLANES - B), (0, 0)))
        rows_alloc = _SUBLANES

    tb = _pick_batch_tile(rows_alloc, _round_up(F, _LANES) * 4)
    grid = (pl.cdiv(rows_alloc, tb),)

    kernel = functools.partial(_rowsum_linear_kernel, n_feature=F)

    y = pl.pallas_call(
        kernel,
        out_shape=jax.ShapeDtypeStruct((rows_alloc, 1), jnp.float32),
        grid=grid,
        in_specs=[
            pl.BlockSpec(memory_space=pltpu.MemorySpace.SMEM),  # bias scalar
            pl.BlockSpec((tb, F), lambda i: (i, 0)),            # x batch tile
            pl.BlockSpec((1, F), lambda i: (0, 0)),             # resident weight row
        ],
        out_specs=pl.BlockSpec((tb, 1), lambda i: (i, 0)),
        compiler_params=_compiler_params(),
    )(b_smem, x, w_row)

    return y[:B]


def linear_net_forward(x, weight, bias):
    """Forward pass of LinearNet: y = x @ weight.T + bias.

    x:      (B, F) float32
    weight: (1, F) float32  (PyTorch nn.Linear layout: (out_features, in_features))
    bias:   (1,)   float32
    returns (B, 1) float32
    """
    B, F = x.shape
    x = x.astype(jnp.float32)
    w_row = weight.reshape(1, F).astype(jnp.float32)
    b_smem = bias.reshape(1, 1).astype(jnp.float32)

    if F < _LANES and _LANES % F == 0:
        k = _LANES // F
        if k > 1 and B % k == 0:
            return _forward_packed(x, w_row, b_smem, B, F, k)
    return _forward_general(x, w_row, b_smem, B, F)


if __name__ == "__main__":
    key = jax.random.PRNGKey(0)
    kx, kw, kb, kx2, kx3, kw3, kb3 = jax.random.split(key, 7)

    batch, n_feature = 8, 32

    # Deterministic parameter init, matching nn.Linear's U(-1/sqrt(F), 1/sqrt(F)).
    bound = 1.0 / jnp.sqrt(jnp.float32(n_feature))
    weight = jax.random.uniform(kw, (1, n_feature), jnp.float32, -bound, bound)
    bias = jax.random.uniform(kb, (1,), jnp.float32, -bound, bound)

    # Small main case (lane-packed path, single grid step).
    x = jax.random.normal(kx, (batch, n_feature), jnp.float32)
    y = jax.block_until_ready(linear_net_forward(x, weight, bias))
    y_ref = x @ weight.T + bias
    assert y.shape == (batch, 1)
    assert jnp.allclose(y, y_ref, atol=1e-5, rtol=1e-5)

    # Larger case: lane-packed path with a multi-step grid and a ragged last block.
    batch2 = 300
    x2 = jax.random.normal(kx2, (batch2, n_feature), jnp.float32)
    y2 = jax.block_until_ready(linear_net_forward(x2, weight, bias))
    y2_ref = x2 @ weight.T + bias
    assert y2.shape == (batch2, 1)
    assert jnp.allclose(y2, y2_ref, atol=1e-5, rtol=1e-5)

    # General path: F > 128 with a lane remainder, ragged batch tail.
    batch3, n_feature3 = 37, 192
    bound3 = 1.0 / jnp.sqrt(jnp.float32(n_feature3))
    weight3 = jax.random.uniform(kw3, (1, n_feature3), jnp.float32, -bound3, bound3)
    bias3 = jax.random.uniform(kb3, (1,), jnp.float32, -bound3, bound3)
    x3 = jax.random.normal(kx3, (batch3, n_feature3), jnp.float32)
    y3 = jax.block_until_ready(linear_net_forward(x3, weight3, bias3))
    y3_ref = x3 @ weight3.T + bias3
    assert y3.shape == (batch3, 1)
    assert jnp.allclose(y3, y3_ref, atol=1e-5, rtol=1e-5)

    print("KERNEL_OK")
</pallas_src>

<mosaic_0001>
module attributes {stable_mosaic.version = 11 : i64} {
  func.func @_packed_linear_kernel(%arg0: i32, %arg1: memref<1x1xf32, #tpu.memory_space<smem>>, %arg2: memref<8x128xf32, #tpu.memory_space<vmem>>, %arg3: memref<128x4xf32, #tpu.memory_space<vmem>>, %arg4: memref<8x4xf32, #tpu.memory_space<vmem>>) attributes {dimension_semantics = [#tpu.dimension_semantics<parallel>], iteration_bounds = array<i64: 1>, scalar_prefetch = 0 : i64, scratch_operands = 0 : i64, tpu.core_type = #tpu.core_type<tc>, window_params = [{transform_indices = @transform_0, window_bounds = array<i64: 1, 1>}, {transform_indices = @transform_1, window_bounds = array<i64: 8, 128>}, {pipeline_mode = #tpu.pipeline_mode<synchronous>, transform_indices = @transform_2, window_bounds = array<i64: 128, 4>}, {transform_indices = @transform_3, window_bounds = array<i64: 8, 4>}]} {
    %c0 = arith.constant 0 : index
    %c0_0 = arith.constant 0 : index
    %0 = memref.load %arg1[%c0, %c0_0] : memref<1x1xf32, #tpu.memory_space<smem>>
    %c0_1 = arith.constant 0 : index
    %c0_2 = arith.constant 0 : index
    %1 = vector.load %arg2[%c0_1, %c0_2] : memref<8x128xf32, #tpu.memory_space<vmem>>, vector<8x128xf32>
    %c0_3 = arith.constant 0 : index
    %c0_4 = arith.constant 0 : index
    %2 = vector.load %arg3[%c0_3, %c0_4] : memref<128x4xf32, #tpu.memory_space<vmem>>, vector<128x4xf32>
    %cst = arith.constant dense<0.000000e+00> : vector<8x4xf32>
    %3 = tpu.matmul %1, %2, %cst {dimension_numbers = #tpu.dot_dimension_numbers<[1], [0], [0], [1], [0, 0, 1, 1], [], []>} : vector<8x128xf32>, vector<128x4xf32>, vector<8x4xf32> -> vector<8x4xf32>
    %4 = vector.broadcast %0 : f32 to vector<8x4xf32>
    %5 = arith.addf %3, %4 : vector<8x4xf32>
    %c0_5 = arith.constant 0 : index
    %c0_6 = arith.constant 0 : index
    %6 = vector.load %arg4[%c0_5, %c0_6] : memref<8x4xf32, #tpu.memory_space<vmem>>, vector<8x4xf32>
    tpu.vector_store %arg4[%c0_5, %c0_6], %5 {strides = array<i32>} : memref<8x4xf32, #tpu.memory_space<vmem>>, vector<8x4xf32>,
    return
  }
  func.func @transform_0(%arg0: i32) -> (i32, i32) {
    %c0_i32 = arith.constant 0 : i32
    %c0_i32_0 = arith.constant 0 : i32
    %c0_i32_1 = arith.constant 0 : i32
    return %c0_i32, %c0_i32_0 : i32, i32
  }
  func.func @transform_1(%arg0: i32) -> (i32, i32) {
    %c0_i32 = arith.constant 0 : i32
    %c0_i32_0 = arith.constant 0 : i32
    return %arg0, %c0_i32 : i32, i32
  }
  func.func @transform_2(%arg0: i32) -> (i32, i32) {
    %c0_i32 = arith.constant 0 : i32
    %c0_i32_0 = arith.constant 0 : i32
    %c0_i32_1 = arith.constant 0 : i32
    return %c0_i32, %c0_i32_0 : i32, i32
  }
  func.func @transform_3(%arg0: i32) -> (i32, i32) {
    %c0_i32 = arith.constant 0 : i32
    %c0_i32_0 = arith.constant 0 : i32
    return %arg0, %c0_i32 : i32, i32
  }
}

</mosaic_0001>

<llo_original>
// kernel: tpu_custom_call.1
$region0: #{tpu_custom_call.1}
  #allocation0 [shape = 'u32[]', space=smem, size = 0x4, offset = 0x4, fixed_abs, tag = 'smem constant byte address 0x4 - core index']
  #allocation1 [shape = 'u32[144,128]{1,0:T(1,128)}', space=vmem, size = 0x12000, scoped, tag = 'internal scratch']
  #allocation2 [shape = 'f32[1,1]{1,0:T(1,128)S(6)}', space=smem, size = 0x200, scoped, tag = 'scoped memory for tpu_custom_call.1']
  %s0 = inlined_call_operand.<no memory space> [shape: f32[1,1], index: 0, kind: input, shape index: {}]
  %s1 = inlined_call_operand.vmem [shape: f32[8,128], index: 1, kind: input, shape index: {}]
  %s2 = inlined_call_operand.vmem [shape: f32[128,4], index: 2, kind: input, shape index: {}]
  %s3 = inlined_call_operand.vmem [shape: f32[8,4], index: 3, kind: output, shape index: {}]
  %s4 = sld [smem:[#allocation0]]
  $region22: #{tpu_custom_call.1} parent=0
    _
  %s6 = ssub.s32 1, %s4
  %s7 = scalar_select 0, %s6, %s4
  %8 = sst [smem:[#allocation2]] %s0
  // Predicated region
  $region2: #{tpu_custom_call.1} parent=0 // pred_check
    _
  $region3: #{tpu_custom_call.1} parent=0 // pred_check_branch
    %10 = sbr.rel (0) target = $region5
  $region4: #{tpu_custom_call.1} parent=0 // pred_region
    _
  $region5: #{tpu_custom_call.1} parent=0 // pred_fallthru
    _
  // Predicated region
  $region6: #{tpu_custom_call.1} parent=0 // pred_check
    _
  $region7: #{tpu_custom_call.1} parent=0 // pred_check_branch
    %12 = sbr.rel (0) target = $region9
  $region8: #{tpu_custom_call.1} parent=0 // pred_region
    _
  $region9: #{tpu_custom_call.1} parent=0 // pred_fallthru
    _
  // Predicated region
  $region10: #{tpu_custom_call.1} parent=0 // pred_check
    _
  $region11: #{tpu_custom_call.1} parent=0 // pred_check_branch
    %14 = sbr.rel (0) target = $region13
  $region12: #{tpu_custom_call.1} parent=0 // pred_region
    _
  $region13: #{tpu_custom_call.1} parent=0 // pred_fallthru
    _
  %s15 = sld [smem:[#allocation2]]
  %v16 = vld [vmem:[%s1] sm:$0xff]
  %v17 = vld [vmem:[%s2] sm:$0xff]
  %v18 = vld [vmem:[%s2 + $0x8] sm:$0xff]
  %v19 = vld [vmem:[%s2 + $0x10] sm:$0xff]
  %v20 = vld [vmem:[%s2 + $0x18] sm:$0xff]
  %v21 = vld [vmem:[%s2 + $0x20] sm:$0xff]
  %v22 = vld [vmem:[%s2 + $0x28] sm:$0xff]
  %v23 = vld [vmem:[%s2 + $0x30] sm:$0xff]
  %v24 = vld [vmem:[%s2 + $0x38] sm:$0xff]
  %v25 = vld [vmem:[%s2 + $0x40] sm:$0xff]
  %v26 = vld [vmem:[%s2 + $0x48] sm:$0xff]
  %v27 = vld [vmem:[%s2 + $0x50] sm:$0xff]
  %v28 = vld [vmem:[%s2 + $0x58] sm:$0xff]
  %v29 = vld [vmem:[%s2 + $0x60] sm:$0xff]
  %v30 = vld [vmem:[%s2 + $0x68] sm:$0xff]
  %v31 = vld [vmem:[%s2 + $0x70] sm:$0xff]
  %v32 = vld [vmem:[%s2 + $0x78] sm:$0xff]
  %v33 = vstv %s15
  %34 = vmatprep.subr.mxu0 0.0
  %35 = vmatpush1.msra.mxu0 %v17
  %36 = vmatprep.subr.mxu0 0.0
  %37 = vmatpush1.msra.mxu0 %v18
  %38 = vmatprep.subr.mxu0 0.0
  %39 = vmatpush1.msra.mxu0 %v19
  %40 = vmatprep.subr.mxu0 0.0
  %41 = vmatpush1.msra.mxu0 %v20
  %42 = vmatprep.subr.mxu0 0.0
  %43 = vmatpush1.msra.mxu0 %v21
  %44 = vmatprep.subr.mxu0 0.0
  %45 = vmatpush1.msra.mxu0 %v22
  %46 = vmatprep.subr.mxu0 0.0
  %47 = vmatpush1.msra.mxu0 %v23
  %48 = vmatprep.subr.mxu0 0.0
  %49 = vmatpush1.msra.mxu0 %v24
  %50 = vmatprep.subr.mxu0 0.0
  %51 = vmatpush1.msra.mxu0 %v25
  %52 = vmatprep.subr.mxu0 0.0
  %53 = vmatpush1.msra.mxu0 %v26
  %54 = vmatprep.subr.mxu0 0.0
  %55 = vmatpush1.msra.mxu0 %v27
  %56 = vmatprep.subr.mxu0 0.0
  %57 = vmatpush1.msra.mxu0 %v28
  %58 = vmatprep.subr.mxu0 0.0
  %59 = vmatpush1.msra.mxu0 %v29
  %60 = vmatprep.subr.mxu0 0.0
  %61 = vmatpush1.msra.mxu0 %v30
  %62 = vmatprep.subr.mxu0 0.0
  %63 = vmatpush1.msra.mxu0 %v31
  %64 = vmatprep.subr.mxu0 0.0
  %65 = vmatpush1.msra.mxu0 %v32
  %66 = vmatprep.subr.mxu0 0.0
  %67 = vmatpush1.msra.mxu0 0.0
  %68 = vmatprep.subr.mxu0 0.0
  %69 = vmatpush1.msra.mxu0 0.0
  %70 = vmatprep.subr.mxu0 0.0
  %71 = vmatpush1.msra.mxu0 0.0
  %72 = vmatprep.subr.mxu0 0.0
  %73 = vmatpush1.msra.mxu0 0.0
  %74 = vmatprep.subr.mxu0 0.0
  %75 = vmatpush1.msra.mxu0 0.0
  %76 = vmatprep.subr.mxu0 0.0
  %77 = vmatpush1.msra.mxu0 0.0
  %78 = vmatprep.subr.mxu0 0.0
  %79 = vmatpush1.msra.mxu0 0.0
  %80 = vmatprep.subr.mxu0 0.0
  %81 = vmatpush1.msra.mxu0 0.0
  %82 = vmatprep.subr.mxu0 0.0
  %83 = vmatpush1.msra.mxu0 0.0
  %84 = vmatprep.subr.mxu0 0.0
  %85 = vmatpush1.msra.mxu0 0.0
  %86 = vmatprep.subr.mxu0 0.0
  %87 = vmatpush1.msra.mxu0 0.0
  %88 = vmatprep.subr.mxu0 0.0
  %89 = vmatpush1.msra.mxu0 0.0
  %90 = vmatprep.subr.mxu0 0.0
  %91 = vmatpush1.msra.mxu0 0.0
  %92 = vmatprep.subr.mxu0 0.0
  %93 = vmatpush1.msra.mxu0 0.0
  %94 = vmatprep.subr.mxu0 0.0
  %95 = vmatpush1.msra.mxu0 0.0
  %96 = vmatprep.subr.mxu0 0.0
  %97 = vmatpush1.msra.mxu0 0.0
  %98 = vmatprep.mubr.f32.mxu0 0.0
  %99 = vmatmul.mubr.f32.gmra.mrb[0].mxu0 %v16
  %v100 = vpop.f32.mrb[0].mxu0
  %v101 = vadd.f32 %v33, %v100
  %v102 = vpop.f32.mrb[0].mxu0
  %103 = vdwg.mxu0
  %vm104 = vcmask 31744
  %105 = vst.msk [vmem:[%s3] sm:$0xff] %vm104, %v101
  // Predicated region
  $region14: #{tpu_custom_call.1} parent=0 // pred_check
    _
  $region15: #{tpu_custom_call.1} parent=0 // pred_check_branch
    %107 = sbr.rel (0) target = $region17
  $region16: #{tpu_custom_call.1} parent=0 // pred_region
    _
  $region17: #{tpu_custom_call.1} parent=0 // pred_fallthru
    _
  // Predicated region
  $region18: #{tpu_custom_call.1} parent=0 // pred_check
    _
  $region19: #{tpu_custom_call.1} parent=0 // pred_check_branch
    %109 = sbr.rel (0) target = $region21
  $region20: #{tpu_custom_call.1} parent=0 // pred_region
    _
  $region21: #{tpu_custom_call.1} parent=0 // pred_fallthru
    _

</llo_original>
